<compile_context>
chip_gen: v7x
topology: tpu7x:2x2x1
jax: 0.10.0
libtpu: 0.0.40
codegen_flags: <defaults>
</compile_context>

<pallas_src>
import numpy as np
import jax
import jax.numpy as jnp
from jax import lax
from jax.experimental import pallas as pl
from jax.experimental.pallas import tpu as pltpu  # noqa: F401  (kept for TPU-specific params if needed)


# ----------------------------- Pallas kernels ------------------------------

def combine_front(doc_embed, embed, gflat, w_att, b_att, wc_d, wc_u, wc_v, b_comb,
                  *, ru, rv):
    """Doc attention + combine_weight + softmax + relation-graph mixing, one call."""
    N = embed.shape[0]
    T, NN = gflat.shape
    P = len(ru)

    def kernel(doc_ref, emb_ref, gflat_ref, watt_ref, batt_ref,
               wcd_ref, wcu_ref, wcv_ref, bcomb_ref, gw_ref, g1_ref):
        doc = doc_ref[...]                                              # (n, E)
        # doc-level attention: softmax over tokens (dim 0); bias kept for fidelity
        scores = jnp.sum(doc * watt_ref[...], axis=1, keepdims=True) + batt_ref[0, 0]
        m = jnp.max(scores, axis=0, keepdims=True)
        e = jnp.exp(scores - m)
        att = e * pl.reciprocal(jnp.sum(e, axis=0, keepdims=True), approx=True)
        doc_e = jnp.sum(att * doc, axis=0, keepdims=True)               # (1, E) == softmax.T @ doc

        emb = emb_ref[...]                                              # (N, E)
        # one-hot pair -> event-row selection matrices (static indices, built from iotas)
        r_io = lax.broadcasted_iota(jnp.int32, (P, N), 0)
        c_io = lax.broadcasted_iota(jnp.int32, (P, N), 1)
        sel_u = jnp.zeros((P, N), jnp.float32)
        sel_v = jnp.zeros((P, N), jnp.float32)
        for p in range(P):
            sel_u = sel_u + ((r_io == p) & (c_io == ru[p])).astype(jnp.float32)
            sel_v = sel_v + ((r_io == p) & (c_io == rv[p])).astype(jnp.float32)

        # combine_weight(g_e) without materializing the (P, 3E) concat:
        #   logits[p] = doc_e @ Wd + embed[ru[p]] @ Wu + embed[rv[p]] @ Wv + b
        lg_doc = jnp.dot(doc_e, wcd_ref[...], preferred_element_type=jnp.float32)   # (1, T)
        lg_u = jnp.dot(sel_u,
                       jnp.dot(emb, wcu_ref[...], preferred_element_type=jnp.float32),
                       preferred_element_type=jnp.float32)                           # (P, T)
        lg_v = jnp.dot(sel_v,
                       jnp.dot(emb, wcv_ref[...], preferred_element_type=jnp.float32),
                       preferred_element_type=jnp.float32)
        logits = lg_doc + lg_u + lg_v + bcomb_ref[...]                               # (P, T)

        lm = jnp.max(logits, axis=1, keepdims=True)
        le = jnp.exp(logits - lm)
        gw = le * pl.reciprocal(jnp.sum(le, axis=1, keepdims=True), approx=True)     # softmax
        gw_ref[...] = gw
        # graph1[p] = sum_t gw[p, t] * graph[t]   (flattened over the last two dims)
        g1_ref[...] = jnp.dot(gw, gflat_ref[...], preferred_element_type=jnp.float32)

    return pl.pallas_call(
        kernel,
        out_shape=(jax.ShapeDtypeStruct((P, T), jnp.float32),
                   jax.ShapeDtypeStruct((P, NN), jnp.float32)),
    )(doc_embed, embed, gflat, w_att, b_att, wc_d, wc_u, wc_v, b_comb)


def gcn_mlp_back(embed, graph1, wg1, bg1, wg2, bg2,
                 wm0a, bm0a, wm0b, bm0b, wm1a, bm1a, wm1b, bm1b,
                 *, ru, rv, same_flags):
    """Both GCN chains (graph1 & graph2), conloss, pair gather and both MLP heads."""
    N, _E = embed.shape
    P = graph1.shape[0]
    G2 = wg2.shape[1]

    def kernel(emb_ref, g1_ref, wg1_ref, bg1_ref, wg2_ref, bg2_ref,
               wm0a_ref, bm0a_ref, wm0b_ref, bm0b_ref,
               wm1a_ref, bm1a_ref, wm1b_ref, bm1b_ref,
               pred_ref, loss_ref, repr_ref):
        # pair-invariant first GCN linear — computed once, shared by all 2P chains
        h0 = jnp.dot(emb_ref[...], wg1_ref[...],
                     preferred_element_type=jnp.float32) + bg1_ref[...]              # (N, G1)
        eye = (lax.broadcasted_iota(jnp.int32, (N, N), 0)
               == lax.broadcasted_iota(jnp.int32, (N, N), 1)).astype(jnp.float32)
        row_io = lax.broadcasted_iota(jnp.int32, (N, 1), 0)

        def chain(g):
            # GCN row normalization (no epsilon, matching the torch reference)
            inv = pl.reciprocal(jnp.sum(g, axis=1, keepdims=True), approx=True)
            gn = g * inv
            h1 = jnp.dot(gn, h0, preferred_element_type=jnp.float32)
            h2 = jnp.dot(h1, wg2_ref[...], preferred_element_type=jnp.float32) + bg2_ref[...]
            h3 = jnp.dot(gn, h2, preferred_element_type=jnp.float32)
            return jnp.maximum(h3, 0.0)                 # relu; gcn_dropout = identity (eval)

        loss_acc = jnp.zeros((1, 1), jnp.float32)
        rep_rows = []
        for p in range(P):
            g1_p = g1_ref[p]                            # (N, N)
            g2_p = jnp.where(g1_p > 0.1, 1.0, eye)      # graph2 (eye with 1s where graph1 > .1)
            act_d = chain(g1_p)                         # dgcn activations (N, G2)
            act_s = chain(g2_p)                         # sgcn activations (N, G2)
            dp = jnp.max(act_d, axis=0, keepdims=True)  # torch.max(., dim=1).values
            ds = jnp.max(act_s, axis=0, keepdims=True)
            diff = dp - ds
            loss_acc = loss_acc + jnp.sum(diff * diff, axis=1, keepdims=True)
            # per-pair event rows via iota one-hot masks (static indices)
            mu = (row_io == ru[p]).astype(jnp.float32)  # (N, 1)
            mv = (row_io == rv[p]).astype(jnp.float32)
            e1 = jnp.sum(act_d * mu, axis=0, keepdims=True)   # (1, G2)
            e2 = jnp.sum(act_d * mv, axis=0, keepdims=True)
            rep_rows.append(jnp.concatenate([e1 + e2, jnp.abs(e1 - e2)], axis=1))
        represen = jnp.concatenate(rep_rows, axis=0)          # (P, 2*G2)
        repr_ref[...] = represen
        loss_ref[...] = loss_acc * (1.0 / (P * G2))           # mean((dp - ds)**2)

        # both MLP heads fused; per-row intra/cross-sentence selection (static flags)
        h_m0 = jnp.maximum(jnp.dot(represen, wm0a_ref[...],
                                   preferred_element_type=jnp.float32) + bm0a_ref[...], 0.0)
        pred0 = jnp.dot(h_m0, wm0b_ref[...], preferred_element_type=jnp.float32) + bm0b_ref[...]
        h_m1 = jnp.maximum(jnp.dot(represen, wm1a_ref[...],
                                   preferred_element_type=jnp.float32) + bm1a_ref[...], 0.0)
        pred1 = jnp.dot(h_m1, wm1b_ref[...], preferred_element_type=jnp.float32) + bm1b_ref[...]
        pr_io = lax.broadcasted_iota(jnp.int32, (P, 2), 0)
        same_mask = jnp.zeros((P, 2), jnp.float32)
        for p in range(P):
            if same_flags[p]:
                same_mask = same_mask + (pr_io == p).astype(jnp.float32)
        pred_ref[...] = same_mask * pred0 + (1.0 - same_mask) * pred1

    return pl.pallas_call(
        kernel,
        out_shape=(jax.ShapeDtypeStruct((P, 2), jnp.float32),
                   jax.ShapeDtypeStruct((1, 1), jnp.float32),
                   jax.ShapeDtypeStruct((P, 2 * G2), jnp.float32)),
    )(embed, graph1, wg1, bg1, wg2, bg2,
      wm0a, bm0a, wm0b, bm0b, wm1a, bm1a, wm1b, bm1b)


# ------------------------------ forward pass --------------------------------

def causal_relation_forward(doc_embed, sentence_mask, event, graph, pair, params):
    """Mirrors CausalRelationModel.forward (eval mode: all dropouts = identity)."""
    n, E = doc_embed.shape
    T, N, _ = graph.shape
    P = len(pair)

    # graph[ind] = graph[ind] / (sum(graph[ind], dims=[1,2], keepdim) / N + 1e-5)  (JAX glue)
    ind = jnp.array([0, 2, 3, 4, 5])
    g_sel = graph[ind]
    denom = jnp.sum(g_sel, axis=(1, 2), keepdims=True) / N + 1e-5
    graph = graph.at[ind].set(g_sel / denom)

    # extend embedding via the reference graph (tiny matmul, JAX glue)
    ref_graph = graph[1][n:, :n]
    ref_graph_norm = ref_graph / jnp.sum(ref_graph, axis=1, keepdims=True)
    extend_embed = ref_graph_norm @ doc_embed
    embed = jnp.concatenate([doc_embed, extend_embed], axis=0)            # (N, E)

    # extract_event bookkeeping (static Python, same semantics as the torch loop)
    event_row = {}
    ie = 0
    for i, e in enumerate(event):
        if e is not None and len(e) > 0:
            event_row[i] = n + ie
            ie += 1
    ru = tuple(event_row[u] for (u, v) in pair)
    rv = tuple(event_row[v] for (u, v) in pair)
    same_flags = tuple(bool(sentence_mask[event[u][0]] == sentence_mask[event[v][0]])
                       for (u, v) in pair)

    # --- fused front kernel: doc attention + combine softmax + graph mixing ---
    wc = params["w_comb"]
    gw, g1flat = combine_front(
        doc_embed, embed, graph.reshape(T, N * N),
        params["w_att"], params["b_att"],
        wc[:E], wc[E:2 * E], wc[2 * E:], params["b_comb"],
        ru=ru, rv=rv)
    graph1 = g1flat.reshape(P, N, N)   # contiguous host reshape (metadata only)

    # --- fused back kernel: both GCN chains + gather + conloss + both MLP heads ---
    prediction, conloss, represen = gcn_mlp_back(
        embed, graph1,
        params["w_g1"], params["b_g1"], params["w_g2"], params["b_g2"],
        params["w_m0a"], params["b_m0a"], params["w_m0b"], params["b_m0b"],
        params["w_m1a"], params["b_m1a"], params["w_m1b"], params["b_m1b"],
        ru=ru, rv=rv, same_flags=same_flags)

    return prediction, conloss[0, 0], represen, gw


# ------------------------------ setup / main ---------------------------------

def linear_params(key, fan_in, fan_out):
    k1, k2 = jax.random.split(key)
    bound = 1.0 / np.sqrt(fan_in)
    w = jax.random.uniform(k1, (fan_in, fan_out), minval=-bound, maxval=bound,
                           dtype=jnp.float32)
    b = jax.random.uniform(k2, (1, fan_out), minval=-bound, maxval=bound,
                           dtype=jnp.float32)
    return w, b


if __name__ == "__main__":
    # small shapes consistent with the forward pass
    E = 32           # embedding_size (=> lstm_size = 16, 2*lstm_size = E)
    G1 = G2 = 16     # gcn_dim
    M = 32           # mlp_dim
    n_tokens = 6
    event = [[0], [2], [3], [5]]                 # 4 events, each non-empty
    num_events = len(event)
    N = n_tokens + num_events                    # graph node count = 10
    sentence_mask = np.array([0, 0, 0, 1, 1, 1]) # 2 sentences
    pair = [(0, 1), (0, 2), (1, 3), (2, 3)]      # mixes intra- and cross-sentence pairs

    key = jax.random.PRNGKey(0)
    keys = jax.random.split(key, 12)

    params = {}
    params["w_g1"], params["b_g1"] = linear_params(keys[0], E, G1)      # gcn1
    params["w_g2"], params["b_g2"] = linear_params(keys[1], G1, G2)     # gcn2
    params["w_comb"], params["b_comb"] = linear_params(keys[2], 3 * E, 7)
    params["w_m0a"], params["b_m0a"] = linear_params(keys[3], 2 * G2, M)
    params["w_m0b"], params["b_m0b"] = linear_params(keys[4], M, 2)
    params["w_m1a"], params["b_m1a"] = linear_params(keys[5], 2 * G2, M)
    params["w_m1b"], params["b_m1b"] = linear_params(keys[6], M, 2)
    w_att_full, b_att_full = linear_params(keys[7], E, 1)
    params["w_att"] = w_att_full.T               # stored as (1, E) for the kernel
    params["b_att"] = b_att_full                 # (1, 1)

    # inputs (doc_embed stands in for the BERT embedding; see TODO above)
    doc_embed = jax.random.normal(keys[8], (n_tokens, E), dtype=jnp.float32)
    graph = jax.random.uniform(keys[9], (7, N, N), minval=0.05, maxval=1.0,
                               dtype=jnp.float32)

    prediction, conloss, represen, gw = causal_relation_forward(
        doc_embed, sentence_mask, event, graph, pair, params)

    jax.block_until_ready((prediction, conloss, represen, gw))
    assert prediction.shape == (len(pair), 2)
    assert represen.shape == (len(pair), 2 * G2)
    assert gw.shape == (len(pair), 7)
    assert np.isfinite(np.asarray(conloss))
    assert np.all(np.isfinite(np.asarray(prediction)))
    print("KERNEL_OK")
</pallas_src>

<mosaic_0001>
module attributes {stable_mosaic.version = 11 : i64} {
  func.func @kernel(%arg0: memref<6x32xf32, #tpu.memory_space<vmem>>, %arg1: memref<10x32xf32, #tpu.memory_space<vmem>>, %arg2: memref<7x100xf32, #tpu.memory_space<vmem>>, %arg3: memref<1x32xf32, #tpu.memory_space<vmem>>, %arg4: memref<1x1xf32, #tpu.memory_space<vmem>>, %arg5: memref<32x7xf32, #tpu.memory_space<vmem>>, %arg6: memref<32x7xf32, #tpu.memory_space<vmem>>, %arg7: memref<32x7xf32, #tpu.memory_space<vmem>>, %arg8: memref<1x7xf32, #tpu.memory_space<vmem>>, %arg9: memref<4x7xf32, #tpu.memory_space<vmem>>, %arg10: memref<4x100xf32, #tpu.memory_space<vmem>>) attributes {dimension_semantics = [], scalar_prefetch = 0 : i64, scratch_operands = 0 : i64, tpu.core_type = #tpu.core_type<tc>} {
    %c0 = arith.constant 0 : index
    %c0_0 = arith.constant 0 : index
    %0 = vector.load %arg0[%c0, %c0_0] : memref<6x32xf32, #tpu.memory_space<vmem>>, vector<6x32xf32>
    %c0_1 = arith.constant 0 : index
    %c0_2 = arith.constant 0 : index
    %1 = vector.load %arg3[%c0_1, %c0_2] : memref<1x32xf32, #tpu.memory_space<vmem>>, vector<1x32xf32>
    %2 = vector.broadcast %1 : vector<1x32xf32> to vector<6x32xf32>
    %3 = arith.mulf %0, %2 : vector<6x32xf32>
    %cst = arith.constant dense<0.000000e+00> : vector<6xf32>
    %4 = vector.multi_reduction <add>, %3, %cst [1] : vector<6x32xf32> to vector<6xf32>
    %5 = vector.shape_cast %4 : vector<6xf32> to vector<6x1xf32>
    %c0_3 = arith.constant 0 : index
    %c0_4 = arith.constant 0 : index
    %6 = vector.load %arg4[%c0_3, %c0_4] : memref<1x1xf32, #tpu.memory_space<vmem>>, vector<1x1xf32>
    %7 = vector.extract %6[0, 0] : f32 from vector<1x1xf32>
    %8 = vector.broadcast %7 : f32 to vector<6x1xf32>
    %9 = arith.addf %5, %8 : vector<6x1xf32>
    %cst_5 = arith.constant dense<0xFF800000> : vector<1xf32>
    %10 = vector.multi_reduction <maximumf>, %9, %cst_5 [0] : vector<6x1xf32> to vector<1xf32>
    %11 = vector.shape_cast %10 : vector<1xf32> to vector<1x1xf32>
    %12 = vector.broadcast %11 : vector<1x1xf32> to vector<6x1xf32>
    %13 = arith.subf %9, %12 : vector<6x1xf32>
    %14 = math.exp %13 : vector<6x1xf32>
    %cst_6 = arith.constant dense<0.000000e+00> : vector<1xf32>
    %15 = vector.multi_reduction <add>, %14, %cst_6 [0] : vector<6x1xf32> to vector<1xf32>
    %16 = vector.shape_cast %15 : vector<1xf32> to vector<1x1xf32>
    %17 = tpu.reciprocal %16 {approx = true} : vector<1x1xf32> -> vector<1x1xf32>
    %18 = vector.broadcast %17 : vector<1x1xf32> to vector<6x1xf32>
    %19 = arith.mulf %14, %18 : vector<6x1xf32>
    %20 = vector.broadcast %19 : vector<6x1xf32> to vector<6x32xf32>
    %21 = arith.mulf %20, %0 : vector<6x32xf32>
    %cst_7 = arith.constant dense<0.000000e+00> : vector<32xf32>
    %22 = vector.multi_reduction <add>, %21, %cst_7 [0] : vector<6x32xf32> to vector<32xf32>
    %23 = vector.shape_cast %22 : vector<32xf32> to vector<1x32xf32>
    %c0_8 = arith.constant 0 : index
    %c0_9 = arith.constant 0 : index
    %24 = vector.load %arg1[%c0_8, %c0_9] : memref<10x32xf32, #tpu.memory_space<vmem>>, vector<10x32xf32>
    %25 = tpu.iota {dimensions = array<i32: 0>} : vector<4x10xi32>
    %26 = tpu.iota {dimensions = array<i32: 1>} : vector<4x10xi32>
    %cst_10 = arith.constant 0.000000e+00 : f32
    %27 = vector.broadcast %cst_10 : f32 to vector<4x10xf32>
    %cst_11 = arith.constant 0.000000e+00 : f32
    %28 = vector.broadcast %cst_11 : f32 to vector<4x10xf32>
    %c0_i32 = arith.constant 0 : i32
    %29 = vector.broadcast %c0_i32 : i32 to vector<4x10xi32>
    %30 = arith.cmpi eq, %25, %29 : vector<4x10xi32>
    %c6_i32 = arith.constant 6 : i32
    %31 = vector.broadcast %c6_i32 : i32 to vector<4x10xi32>
    %32 = arith.cmpi eq, %26, %31 : vector<4x10xi32>
    %33 = arith.andi %30, %32 : vector<4x10xi1>
    %34 = arith.extui %33 : vector<4x10xi1> to vector<4x10xi32>
    %35 = arith.sitofp %34 : vector<4x10xi32> to vector<4x10xf32>
    %36 = arith.addf %27, %35 : vector<4x10xf32>
    %c0_i32_12 = arith.constant 0 : i32
    %37 = vector.broadcast %c0_i32_12 : i32 to vector<4x10xi32>
    %38 = arith.cmpi eq, %25, %37 : vector<4x10xi32>
    %c7_i32 = arith.constant 7 : i32
    %39 = vector.broadcast %c7_i32 : i32 to vector<4x10xi32>
    %40 = arith.cmpi eq, %26, %39 : vector<4x10xi32>
    %41 = arith.andi %38, %40 : vector<4x10xi1>
    %42 = arith.extui %41 : vector<4x10xi1> to vector<4x10xi32>
    %43 = arith.sitofp %42 : vector<4x10xi32> to vector<4x10xf32>
    %44 = arith.addf %28, %43 : vector<4x10xf32>
    %c1_i32 = arith.constant 1 : i32
    %45 = vector.broadcast %c1_i32 : i32 to vector<4x10xi32>
    %46 = arith.cmpi eq, %25, %45 : vector<4x10xi32>
    %c6_i32_13 = arith.constant 6 : i32
    %47 = vector.broadcast %c6_i32_13 : i32 to vector<4x10xi32>
    %48 = arith.cmpi eq, %26, %47 : vector<4x10xi32>
    %49 = arith.andi %46, %48 : vector<4x10xi1>
    %50 = arith.extui %49 : vector<4x10xi1> to vector<4x10xi32>
    %51 = arith.sitofp %50 : vector<4x10xi32> to vector<4x10xf32>
    %52 = arith.addf %36, %51 : vector<4x10xf32>
    %c1_i32_14 = arith.constant 1 : i32
    %53 = vector.broadcast %c1_i32_14 : i32 to vector<4x10xi32>
    %54 = arith.cmpi eq, %25, %53 : vector<4x10xi32>
    %c8_i32 = arith.constant 8 : i32
    %55 = vector.broadcast %c8_i32 : i32 to vector<4x10xi32>
    %56 = arith.cmpi eq, %26, %55 : vector<4x10xi32>
    %57 = arith.andi %54, %56 : vector<4x10xi1>
    %58 = arith.extui %57 : vector<4x10xi1> to vector<4x10xi32>
    %59 = arith.sitofp %58 : vector<4x10xi32> to vector<4x10xf32>
    %60 = arith.addf %44, %59 : vector<4x10xf32>
    %c2_i32 = arith.constant 2 : i32
    %61 = vector.broadcast %c2_i32 : i32 to vector<4x10xi32>
    %62 = arith.cmpi eq, %25, %61 : vector<4x10xi32>
    %c7_i32_15 = arith.constant 7 : i32
    %63 = vector.broadcast %c7_i32_15 : i32 to vector<4x10xi32>
    %64 = arith.cmpi eq, %26, %63 : vector<4x10xi32>
    %65 = arith.andi %62, %64 : vector<4x10xi1>
    %66 = arith.extui %65 : vector<4x10xi1> to vector<4x10xi32>
    %67 = arith.sitofp %66 : vector<4x10xi32> to vector<4x10xf32>
    %68 = arith.addf %52, %67 : vector<4x10xf32>
    %c2_i32_16 = arith.constant 2 : i32
    %69 = vector.broadcast %c2_i32_16 : i32 to vector<4x10xi32>
    %70 = arith.cmpi eq, %25, %69 : vector<4x10xi32>
    %c9_i32 = arith.constant 9 : i32
    %71 = vector.broadcast %c9_i32 : i32 to vector<4x10xi32>
    %72 = arith.cmpi eq, %26, %71 : vector<4x10xi32>
    %73 = arith.andi %70, %72 : vector<4x10xi1>
    %74 = arith.extui %73 : vector<4x10xi1> to vector<4x10xi32>
    %75 = arith.sitofp %74 : vector<4x10xi32> to vector<4x10xf32>
    %76 = arith.addf %60, %75 : vector<4x10xf32>
    %c3_i32 = arith.constant 3 : i32
    %77 = vector.broadcast %c3_i32 : i32 to vector<4x10xi32>
    %78 = arith.cmpi eq, %25, %77 : vector<4x10xi32>
    %c8_i32_17 = arith.constant 8 : i32
    %79 = vector.broadcast %c8_i32_17 : i32 to vector<4x10xi32>
    %80 = arith.cmpi eq, %26, %79 : vector<4x10xi32>
    %81 = arith.andi %78, %80 : vector<4x10xi1>
    %82 = arith.extui %81 : vector<4x10xi1> to vector<4x10xi32>
    %83 = arith.sitofp %82 : vector<4x10xi32> to vector<4x10xf32>
    %84 = arith.addf %68, %83 : vector<4x10xf32>
    %c3_i32_18 = arith.constant 3 : i32
    %85 = vector.broadcast %c3_i32_18 : i32 to vector<4x10xi32>
    %86 = arith.cmpi eq, %25, %85 : vector<4x10xi32>
    %c9_i32_19 = arith.constant 9 : i32
    %87 = vector.broadcast %c9_i32_19 : i32 to vector<4x10xi32>
    %88 = arith.cmpi eq, %26, %87 : vector<4x10xi32>
    %89 = arith.andi %86, %88 : vector<4x10xi1>
    %90 = arith.extui %89 : vector<4x10xi1> to vector<4x10xi32>
    %91 = arith.sitofp %90 : vector<4x10xi32> to vector<4x10xf32>
    %92 = arith.addf %76, %91 : vector<4x10xf32>
    %c0_20 = arith.constant 0 : index
    %c0_21 = arith.constant 0 : index
    %93 = vector.load %arg5[%c0_20, %c0_21] : memref<32x7xf32, #tpu.memory_space<vmem>>, vector<32x7xf32>
    %cst_22 = arith.constant dense<0.000000e+00> : vector<1x7xf32>
    %94 = tpu.matmul %23, %93, %cst_22 {dimension_numbers = #tpu.dot_dimension_numbers<[1], [0], [0], [1], [0, 0, 1, 1], [], []>} : vector<1x32xf32>, vector<32x7xf32>, vector<1x7xf32> -> vector<1x7xf32>
    %c0_23 = arith.constant 0 : index
    %c0_24 = arith.constant 0 : index
    %95 = vector.load %arg6[%c0_23, %c0_24] : memref<32x7xf32, #tpu.memory_space<vmem>>, vector<32x7xf32>
    %cst_25 = arith.constant dense<0.000000e+00> : vector<10x7xf32>
    %96 = tpu.matmul %24, %95, %cst_25 {dimension_numbers = #tpu.dot_dimension_numbers<[1], [0], [0], [1], [0, 0, 1, 1], [], []>} : vector<10x32xf32>, vector<32x7xf32>, vector<10x7xf32> -> vector<10x7xf32>
    %cst_26 = arith.constant dense<0.000000e+00> : vector<4x7xf32>
    %97 = tpu.matmul %84, %96, %cst_26 {dimension_numbers = #tpu.dot_dimension_numbers<[1], [0], [0], [1], [0, 0, 1, 1], [], []>} : vector<4x10xf32>, vector<10x7xf32>, vector<4x7xf32> -> vector<4x7xf32>
    %c0_27 = arith.constant 0 : index
    %c0_28 = arith.constant 0 : index
    %98 = vector.load %arg7[%c0_27, %c0_28] : memref<32x7xf32, #tpu.memory_space<vmem>>, vector<32x7xf32>
    %cst_29 = arith.constant dense<0.000000e+00> : vector<10x7xf32>
    %99 = tpu.matmul %24, %98, %cst_29 {dimension_numbers = #tpu.dot_dimension_numbers<[1], [0], [0], [1], [0, 0, 1, 1], [], []>} : vector<10x32xf32>, vector<32x7xf32>, vector<10x7xf32> -> vector<10x7xf32>
    %cst_30 = arith.constant dense<0.000000e+00> : vector<4x7xf32>
    %100 = tpu.matmul %92, %99, %cst_30 {dimension_numbers = #tpu.dot_dimension_numbers<[1], [0], [0], [1], [0, 0, 1, 1], [], []>} : vector<4x10xf32>, vector<10x7xf32>, vector<4x7xf32> -> vector<4x7xf32>
    %101 = vector.broadcast %94 : vector<1x7xf32> to vector<4x7xf32>
    %102 = arith.addf %101, %97 : vector<4x7xf32>
    %103 = arith.addf %102, %100 : vector<4x7xf32>
    %c0_31 = arith.constant 0 : index
    %c0_32 = arith.constant 0 : index
    %104 = vector.load %arg8[%c0_31, %c0_32] : memref<1x7xf32, #tpu.memory_space<vmem>>, vector<1x7xf32>
    %105 = vector.broadcast %104 : vector<1x7xf32> to vector<4x7xf32>
    %106 = arith.addf %103, %105 : vector<4x7xf32>
    %cst_33 = arith.constant dense<0xFF800000> : vector<4xf32>
    %107 = vector.multi_reduction <maximumf>, %106, %cst_33 [1] : vector<4x7xf32> to vector<4xf32>
    %108 = vector.shape_cast %107 : vector<4xf32> to vector<4x1xf32>
    %109 = vector.broadcast %108 : vector<4x1xf32> to vector<4x7xf32>
    %110 = arith.subf %106, %109 : vector<4x7xf32>
    %111 = math.exp %110 : vector<4x7xf32>
    %cst_34 = arith.constant dense<0.000000e+00> : vector<4xf32>
    %112 = vector.multi_reduction <add>, %111, %cst_34 [1] : vector<4x7xf32> to vector<4xf32>
    %113 = vector.shape_cast %112 : vector<4xf32> to vector<4x1xf32>
    %114 = tpu.reciprocal %113 {approx = true} : vector<4x1xf32> -> vector<4x1xf32>
    %115 = vector.broadcast %114 : vector<4x1xf32> to vector<4x7xf32>
    %116 = arith.mulf %111, %115 : vector<4x7xf32>
    %c0_35 = arith.constant 0 : index
    %c0_36 = arith.constant 0 : index
    %117 = vector.load %arg9[%c0_35, %c0_36] : memref<4x7xf32, #tpu.memory_space<vmem>>, vector<4x7xf32>
    tpu.vector_store %arg9[%c0_35, %c0_36], %116 {strides = array<i32>} : memref<4x7xf32, #tpu.memory_space<vmem>>, vector<4x7xf32>,
    %c0_37 = arith.constant 0 : index
    %c0_38 = arith.constant 0 : index
    %118 = vector.load %arg2[%c0_37, %c0_38] : memref<7x100xf32, #tpu.memory_space<vmem>>, vector<7x100xf32>
    %cst_39 = arith.constant dense<0.000000e+00> : vector<4x100xf32>
    %119 = tpu.matmul %116, %118, %cst_39 {dimension_numbers = #tpu.dot_dimension_numbers<[1], [0], [0], [1], [0, 0, 1, 1], [], []>} : vector<4x7xf32>, vector<7x100xf32>, vector<4x100xf32> -> vector<4x100xf32>
    %c0_40 = arith.constant 0 : index
    %c0_41 = arith.constant 0 : index
    %120 = vector.load %arg10[%c0_40, %c0_41] : memref<4x100xf32, #tpu.memory_space<vmem>>, vector<4x100xf32>
    tpu.vector_store %arg10[%c0_40, %c0_41], %119 {strides = array<i32>} : memref<4x100xf32, #tpu.memory_space<vmem>>, vector<4x100xf32>,
    return
  }
}

</mosaic_0001>

<llo_original>
// kernel: tpu_custom_call.1
$region0: #{tpu_custom_call.1}
  #allocation0 [shape = 'u32[]', space=smem, size = 0x4, offset = 0x4, fixed_abs, tag = 'smem constant byte address 0x4 - core index']
  #allocation1 [shape = 'u32[144,128]{1,0:T(1,128)}', space=vmem, size = 0x12000, scoped, tag = 'internal scratch']
  #allocation2 [shape = 'f32[1,1]{1,0:T(1,128)S(1)}', space=vmem, size = 0x200, scoped, tag = 'scoped memory for tpu_custom_call.1']
  %s0 = inlined_call_operand.vmem [shape: f32[6,32], index: 0, kind: input, shape index: {}]
  %s1 = inlined_call_operand.vmem [shape: f32[10,32], index: 1, kind: input, shape index: {}]
  %s2 = inlined_call_operand.vmem [shape: f32[7,100], index: 2, kind: input, shape index: {}]
  %s3 = inlined_call_operand.vmem [shape: f32[1,32], index: 3, kind: input, shape index: {}]
  %s4 = inlined_call_operand.<no memory space> [shape: f32[1,1], index: 4, kind: input, shape index: {}]
  %s5 = inlined_call_operand.vmem [shape: f32[32,7], index: 5, kind: input, shape index: {}]
  %s6 = inlined_call_operand.vmem [shape: f32[32,7], index: 6, kind: input, shape index: {}]
  %s7 = inlined_call_operand.vmem [shape: f32[32,7], index: 7, kind: input, shape index: {}]
  %s8 = inlined_call_operand.vmem [shape: f32[1,7], index: 8, kind: input, shape index: {}]
  %s9 = inlined_call_operand.hbm [shape: f32[4,7], index: 9, kind: output, shape index: {0}]
  %s10 = inlined_call_operand.hbm [shape: f32[4,100], index: 10, kind: output, shape index: {1}]
  %11 = xla_tuple %s9, %s10
  %s12 = sld [smem:[#allocation0]]
  $region54: #{tpu_custom_call.1} parent=0
    _
  %s14 = ssub.s32 1, %s12
  %s15 = scalar_select 0, %s14, %s12
  %v16 = vstv %s4
  %17 = vst [vmem:[#allocation2] sm:$0x1] %v16
  $region1: #{tpu_custom_call.1} parent=0
    #allocation3 [shape = 'u8[2048]{0}', space=vmem, size = 0x800, scoped, tag = 'output window, operand 0, single buffered']
    #allocation4 [shape = 's32[1]{0}', space=sflag, size = 0x4, scoped, tag = 'scoped memory for tpu_custom_call.1']
    #allocation5 [shape = 'u8[2048]{0}', space=vmem, size = 0x800, scoped, tag = 'output window, operand 1, single buffered']
    #allocation6 [shape = 's32[1]{0}', space=sflag, size = 0x4, scoped, tag = 'scoped memory for tpu_custom_call.1']
    %18 = vsyncpa [#allocation4], 0
    %19 = vsyncpa [#allocation6], 0
    // Predicated region
    $region2: #{tpu_custom_call.1} parent=1 // pred_check
      _
    $region3: #{tpu_custom_call.1} parent=1 // pred_check_branch
      %21 = sbr.rel (0) target = $region5
    $region4: #{tpu_custom_call.1} parent=1 // pred_region
      _
    $region5: #{tpu_custom_call.1} parent=1 // pred_fallthru
      _
    // Predicated region
    $region6: #{tpu_custom_call.1} parent=1 // pred_check
      _
    $region7: #{tpu_custom_call.1} parent=1 // pred_check_branch
      %23 = sbr.rel (0) target = $region9
    $region8: #{tpu_custom_call.1} parent=1 // pred_region
      _
    $region9: #{tpu_custom_call.1} parent=1 // pred_fallthru
      _
    // Predicated region
    $region10: #{tpu_custom_call.1} parent=1 // pred_check
      _
    $region11: #{tpu_custom_call.1} parent=1 // pred_check_branch
      %25 = sbr.rel (0) target = $region13
    $region12: #{tpu_custom_call.1} parent=1 // pred_region
      _
    $region13: #{tpu_custom_call.1} parent=1 // pred_fallthru
      _
    // Predicated region
    $region14: #{tpu_custom_call.1} parent=1 // pred_check
      _
    $region15: #{tpu_custom_call.1} parent=1 // pred_check_branch
      %27 = sbr.rel (0) target = $region17
    $region16: #{tpu_custom_call.1} parent=1 // pred_region
      _
    $region17: #{tpu_custom_call.1} parent=1 // pred_fallthru
      _
    // Predicated region
    $region18: #{tpu_custom_call.1} parent=1 // pred_check
      _
    $region19: #{tpu_custom_call.1} parent=1 // pred_check_branch
      %29 = sbr.rel (0) target = $region21
    $region20: #{tpu_custom_call.1} parent=1 // pred_region
      _
    $region21: #{tpu_custom_call.1} parent=1 // pred_fallthru
      _
    // Predicated region
    $region22: #{tpu_custom_call.1} parent=1 // pred_check
      _
    $region23: #{tpu_custom_call.1} parent=1 // pred_check_branch
      %31 = sbr.rel (0) target = $region25
    $region24: #{tpu_custom_call.1} parent=1 // pred_region
      _
    $region25: #{tpu_custom_call.1} parent=1 // pred_fallthru
      _
    // Predicated region
    $region26: #{tpu_custom_call.1} parent=1 // pred_check
      _
    $region27: #{tpu_custom_call.1} parent=1 // pred_check_branch
      %33 = sbr.rel (0) target = $region29
    $region28: #{tpu_custom_call.1} parent=1 // pred_region
      _
    $region29: #{tpu_custom_call.1} parent=1 // pred_fallthru
      _
    // Predicated region
    $region30: #{tpu_custom_call.1} parent=1 // pred_check
      _
    $region31: #{tpu_custom_call.1} parent=1 // pred_check_branch
      %35 = sbr.rel (0) target = $region33
    $region32: #{tpu_custom_call.1} parent=1 // pred_region
      _
    $region33: #{tpu_custom_call.1} parent=1 // pred_fallthru
      _
    // Predicated region
    $region34: #{tpu_custom_call.1} parent=1 // pred_check
      _
    $region35: #{tpu_custom_call.1} parent=1 // pred_check_branch
      %37 = sbr.rel (0) target = $region37
    $region36: #{tpu_custom_call.1} parent=1 // pred_region
      _
    $region37: #{tpu_custom_call.1} parent=1 // pred_fallthru
      _
    %v38 = vld [vmem:[%s0] sm:$0x3f]
    %v39 = vld [vmem:[%s3] sm:$0x1]
    %v41 = vlaneseq
    %v42 = vshrl.u32 %v41, 7
    %v43 = vsub.s32 0, %v42
    %v44 = vrot.slane %v39, %v43
    %v46 = vmul.f32 %v38, %v44
    %vm47 = vcmask 259072
    %v48 = vsel %vm47, %v46, 0.0
    %49 = vadd.xlane.f32.xlu0 %v48
    %v50 = vpop.xlane.xlu0 %49
    %v51 = vld [vmem:[#allocation2] sm:$0x1]
    %s52 = vtos %v51
    %v53 = vstv %s52
    %v54 = vadd.f32 %v50, %v53
    %vm55 = vcmask 1045504
    %v56 = vsel %vm55, %v54, -inf
    %v57 = vrot.slane %v56, 4
    %v58 = vmax.f32 %v56, %v57
    %v59 = vrot.slane %v58, 2
    %v60 = vmax.f32 %v58, %v59
    %v61 = vrot.slane %v60, 1
    %v62 = vmax.f32 %v60, %v61
    %v63 = vsub.f32 %v54, %v62
    %v64 = vmul.f32 %v63, 1.442695
    %v65 = vpow.pop %v64
    %v66 = vsel %vm55, %v65, 0.0
    %v67 = vrot.slane %v66, 4
    %v68 = vadd.f32 %v66, %v67
    %v69 = vrot.slane %v68, 2
    %v70 = vadd.f32 %v68, %v69
    %v71 = vrot.slane %v70, 1
    %v72 = vadd.f32 %v70, %v71
    %v73 = vrcp.pop %v72
    %v74 = vmul.f32 %v65, %v73
    %v75 = vmul.f32 %v74, %v38
    %v76 = vsel %vm47, %v75, 0.0
    %v77 = vrot.slane %v76, 4
    %v78 = vadd.f32 %v76, %v77
    %v79 = vrot.slane %v78, 2
    %v80 = vadd.f32 %v78, %v79
    %v81 = vrot.slane %v80, 1
    %v82 = vadd.f32 %v80, %v81
    %v83 = vld [vmem:[%s1] sm:$0xff]
    %v84 = vld [vmem:[%s1 + $0x8] sm:$0x3]
    %v85 = vlaneseq
    %v86 = vshrl.u32 %v85, 7
    %v87 = vlaneseq
    %v88 = vand.u32 %v87, 127
    %vm89 = vcmp.eq.s32.totalorder %v86, 0
    %vm90 = vcmp.eq.s32.totalorder %v88, 6
    %vm91 = vmand %vm89, %vm90
    %v92 = vsel %vm91, 1, 0
    %v93 = vcvt.s32.f32 %v92
    %v94 = vadd.f32 %v93, 0.0
    %vm95 = vcmp.eq.s32.totalorder %v88, 7
    %vm96 = vmand %vm89, %vm95
    %v97 = vsel %vm96, 1, 0
    %v98 = vcvt.s32.f32 %v97
    %v99 = vadd.f32 %v98, 0.0
    %vm100 = vcmp.eq.s32.totalorder %v86, 1
    %vm101 = vmand %vm100, %vm90
    %v102 = vsel %vm101, 1, 0
    %v103 = vcvt.s32.f32 %v102
    %v104 = vadd.f32 %v94, %v103
    %vm105 = vcmp.eq.s32.totalorder %v88, 8
    %vm106 = vmand %vm100, %vm105
    %v107 = vsel %vm106, 1, 0
    %v108 = vcvt.s32.f32 %v107
    %v109 = vadd.f32 %v99, %v108
    %vm110 = vcmp.eq.s32.totalorder %v86, 2
    %vm111 = vmand %vm110, %vm95
    %v112 = vsel %vm111, 1, 0
    %v113 = vcvt.s32.f32 %v112
    %v114 = vadd.f32 %v104, %v113
    %vm115 = vcmp.eq.s32.totalorder %v88, 9
    %vm116 = vmand %vm110, %vm115
    %v117 = vsel %vm116, 1, 0
    %v118 = vcvt.s32.f32 %v117
    %v119 = vadd.f32 %v109, %v118
    %vm120 = vcmp.eq.s32.totalorder %v86, 3
    %vm121 = vmand %vm120, %vm105
    %v122 = vsel %vm121, 1, 0
    %v123 = vcvt.s32.f32 %v122
    %v124 = vadd.f32 %v114, %v123
    %vm125 = vmand %vm120, %vm115
    %v126 = vsel %vm125, 1, 0
    %v127 = vcvt.s32.f32 %v126
    %v128 = vadd.f32 %v119, %v127
    %v129 = vld [vmem:[%s5] sm:$0xff]
    %v130 = vld [vmem:[%s5 + $0x8] sm:$0xff]
    %v131 = vld [vmem:[%s5 + $0x10] sm:$0xff]
    %v132 = vld [vmem:[%s5 + $0x18] sm:$0xff]
    %vm133 = vcmask 261120
    %v135 = vsel %vm133, %v82, 0
    %137 = vmatprep.subr.mxu0 0.0
    %138 = vmatpush1.msra.mxu0 %v129
    %139 = vmatprep.subr.mxu0 0.0
    %140 = vmatpush1.msra.mxu0 %v130
    %141 = vmatprep.subr.mxu0 0.0
    %142 = vmatpush1.msra.mxu0 %v131
    %143 = vmatprep.subr.mxu0 0.0
    %144 = vmatpush1.msra.mxu0 %v132
    %145 = vmatprep.subr.mxu0 0.0
    %146 = vmatpush1.msra.mxu0 0.0
    %147 = vmatprep.subr.mxu0 0.0
    %148 = vmatpush1.msra.mxu0 0.0
    %149 = vmatprep.subr.mxu0 0.0
    %150 = vmatpush1.msra.mxu0 0.0
    %151 = vmatprep.subr.mxu0 0.0
    %152 = vmatpush1.msra.mxu0 0.0
    %153 = vmatprep.subr.mxu0 0.0
    %154 = vmatpush1.msra.mxu0 0.0
    %155 = vmatprep.subr.mxu0 0.0
    %156 = vmatpush1.msra.mxu0 0.0
    %157 = vmatprep.subr.mxu0 0.0
    %158 = vmatpush1.msra.mxu0 0.0
    %159 = vmatprep.subr.mxu0 0.0
    %160 = vmatpush1.msra.mxu0 0.0
    %161 = vmatprep.subr.mxu0 0.0
    %162 = vmatpush1.msra.mxu0 0.0
    %163 = vmatprep.subr.mxu0 0.0
    %164 = vmatpush1.msra.mxu0 0.0
    %165 = vmatprep.subr.mxu0 0.0
    %166 = vmatpush1.msra.mxu0 0.0
    %167 = vmatprep.subr.mxu0 0.0
    %168 = vmatpush1.msra.mxu0 0.0
    %169 = vmatprep.subr.mxu0 0.0
    %170 = vmatpush1.msra.mxu0 0.0
    %171 = vmatprep.subr.mxu0 0.0
    %172 = vmatpush1.msra.mxu0 0.0
    %173 = vmatprep.subr.mxu0 0.0
    %174 = vmatpush1.msra.mxu0 0.0
    %175 = vmatprep.subr.mxu0 0.0
    %176 = vmatpush1.msra.mxu0 0.0
    %177 = vmatprep.subr.mxu0 0.0
    %178 = vmatpush1.msra.mxu0 0.0
    %179 = vmatprep.subr.mxu0 0.0
    %180 = vmatpush1.msra.mxu0 0.0
    %181 = vmatprep.subr.mxu0 0.0
    %182 = vmatpush1.msra.mxu0 0.0
    %183 = vmatprep.subr.mxu0 0.0
    %184 = vmatpush1.msra.mxu0 0.0
    %185 = vmatprep.subr.mxu0 0.0
    %186 = vmatpush1.msra.mxu0 0.0
    %187 = vmatprep.subr.mxu0 0.0
    %188 = vmatpush1.msra.mxu0 0.0
    %189 = vmatprep.subr.mxu0 0.0
    %190 = vmatpush1.msra.mxu0 0.0
    %191 = vmatprep.subr.mxu0 0.0
    %192 = vmatpush1.msra.mxu0 0.0
    %193 = vmatprep.subr.mxu0 0.0
    %194 = vmatpush1.msra.mxu0 0.0
    %195 = vmatprep.subr.mxu0 0.0
    %196 = vmatpush1.msra.mxu0 0.0
    %197 = vmatprep.subr.mxu0 0.0
    %198 = vmatpush1.msra.mxu0 0.0
    %199 = vmatprep.subr.mxu0 0.0
    %200 = vmatpush1.msra.mxu0 0.0
    %201 = vmatprep.mubr.f32.mxu0 0.0
    %202 = vmatmul.mubr.f32.gmra.mrb[0].mxu0 %v135
    %v203 = vpop.f32.mrb[0].mxu0
    %v204 = vadd.f32 0.0, %v203
    %v205 = vpop.f32.mrb[0].mxu0
    %206 = vdwg.mxu0
    %v207 = vld [vmem:[%s6] sm:$0xff]
    %v208 = vld [vmem:[%s6 + $0x8] sm:$0xff]
    %v209 = vld [vmem:[%s6 + $0x10] sm:$0xff]
    %v210 = vld [vmem:[%s6 + $0x18] sm:$0xff]
    %v212 = vsel %vm133, %v83, 0
    %v215 = vsel %vm133, %v84, 0
    %217 = vmatprep.subr.mxu0 0.0
    %218 = vmatpush1.msra.mxu0 %v207
    %219 = vmatprep.subr.mxu0 0.0
    %220 = vmatpush1.msra.mxu0 %v208
    %221 = vmatprep.subr.mxu0 0.0
    %222 = vmatpush1.msra.mxu0 %v209
    %223 = vmatprep.subr.mxu0 0.0
    %224 = vmatpush1.msra.mxu0 %v210
    %225 = vmatprep.subr.mxu0 0.0
    %226 = vmatpush1.msra.mxu0 0.0
    %227 = vmatprep.subr.mxu0 0.0
    %228 = vmatpush1.msra.mxu0 0.0
    %229 = vmatprep.subr.mxu0 0.0
    %230 = vmatpush1.msra.mxu0 0.0
    %231 = vmatprep.subr.mxu0 0.0
    %232 = vmatpush1.msra.mxu0 0.0
    %233 = vmatprep.subr.mxu0 0.0
    %234 = vmatpush1.msra.mxu0 0.0
    %235 = vmatprep.subr.mxu0 0.0
    %236 = vmatpush1.msra.mxu0 0.0
    %237 = vmatprep.subr.mxu0 0.0
    %238 = vmatpush1.msra.mxu0 0.0
    %239 = vmatprep.subr.mxu0 0.0
    %240 = vmatpush1.msra.mxu0 0.0
    %241 = vmatprep.subr.mxu0 0.0
    %242 = vmatpush1.msra.mxu0 0.0
    %243 = vmatprep.subr.mxu0 0.0
    %244 = vmatpush1.msra.mxu0 0.0
    %245 = vmatprep.subr.mxu0 0.0
    %246 = vmatpush1.msra.mxu0 0.0
    %247 = vmatprep.subr.mxu0 0.0
    %248 = vmatpush1.msra.mxu0 0.0
    %249 = vmatprep.subr.mxu0 0.0
    %250 = vmatpush1.msra.mxu0 0.0
    %251 = vmatprep.subr.mxu0 0.0
    %252 = vmatpush1.msra.mxu0 0.0
    %253 = vmatprep.subr.mxu0 0.0
    %254 = vmatpush1.msra.mxu0 0.0
    %255 = vmatprep.subr.mxu0 0.0
    %256 = vmatpush1.msra.mxu0 0.0
    %257 = vmatprep.subr.mxu0 0.0
    %258 = vmatpush1.msra.mxu0 0.0
    %259 = vmatprep.subr.mxu0 0.0
    %260 = vmatpush1.msra.mxu0 0.0
    %261 = vmatprep.subr.mxu0 0.0
    %262 = vmatpush1.msra.mxu0 0.0
    %263 = vmatprep.subr.mxu0 0.0
    %264 = vmatpush1.msra.mxu0 0.0
    %265 = vmatprep.subr.mxu0 0.0
    %266 = vmatpush1.msra.mxu0 0.0
    %267 = vmatprep.subr.mxu0 0.0
    %268 = vmatpush1.msra.mxu0 0.0
    %269 = vmatprep.subr.mxu0 0.0
    %270 = vmatpush1.msra.mxu0 0.0
    %271 = vmatprep.subr.mxu0 0.0
    %272 = vmatpush1.msra.mxu0 0.0
    %273 = vmatprep.subr.mxu0 0.0
    %274 = vmatpush1.msra.mxu0 0.0
    %275 = vmatprep.subr.mxu0 0.0
    %276 = vmatpush1.msra.mxu0 0.0
    %277 = vmatprep.subr.mxu0 0.0
    %278 = vmatpush1.msra.mxu0 0.0
    %279 = vmatprep.subr.mxu0 0.0
    %280 = vmatpush1.msra.mxu0 0.0
    %281 = vmatprep.mubr.f32.mxu0 0.0
    %282 = vmatmul.mubr.f32.gmra.mrb[0].mxu0 %v212
    %v283 = vpop.f32.mrb[0].mxu0
    %v284 = vadd.f32 0.0, %v283
    %v285 = vpop.f32.mrb[0].mxu0
    %286 = vmatprep.mubr.f32.mxu0 0.0
    %287 = vmatmul.mubr.f32.gmra.mrb[0].mxu0 %v215
    %v288 = vpop.f32.mrb[0].mxu0
    %v289 = vadd.f32 0.0, %v288
    %v290 = vpop.f32.mrb[0].mxu0
    %291 = vdwg.mxu0
    %vm292 = vcmask 80896
    %v294 = vsel %vm292, %v124, 0
    %vm296 = vcmask 1041408
    %v298 = vsel %vm296, %v289, 0
    %300 = vmatprep.subr.mxu0 0.0
    %301 = vmatpush1.msra.mxu0 %v284
    %302 = vmatprep.subr.mxu0 0.0
    %303 = vmatpush1.msra.mxu0 %v298
    %304 = vmatprep.subr.mxu0 0.0
    %305 = vmatpush1.msra.mxu0 0.0
    %306 = vmatprep.subr.mxu0 0.0
    %307 = vmatpush1.msra.mxu0 0.0
    %308 = vmatprep.subr.mxu0 0.0
    %309 = vmatpush1.msra.mxu0 0.0
    %310 = vmatprep.subr.mxu0 0.0
    %311 = vmatpush1.msra.mxu0 0.0
    %312 = vmatprep.subr.mxu0 0.0
    %313 = vmatpush1.msra.mxu0 0.0
    %314 = vmatprep.subr.mxu0 0.0
    %315 = vmatpush1.msra.mxu0 0.0
    %316 = vmatprep.subr.mxu0 0.0
    %317 = vmatpush1.msra.mxu0 0.0
    %318 = vmatprep.subr.mxu0 0.0
    %319 = vmatpush1.msra.mxu0 0.0
    %320 = vmatprep.subr.mxu0 0.0
    %321 = vmatpush1.msra.mxu0 0.0
    %322 = vmatprep.subr.mxu0 0.0
    %323 = vmatpush1.msra.mxu0 0.0
    %324 = vmatprep.subr.mxu0 0.0
    %325 = vmatpush1.msra.mxu0 0.0
    %326 = vmatprep.subr.mxu0 0.0
    %327 = vmatpush1.msra.mxu0 0.0
    %328 = vmatprep.subr.mxu0 0.0
    %329 = vmatpush1.msra.mxu0 0.0
    %330 = vmatprep.subr.mxu0 0.0
    %331 = vmatpush1.msra.mxu0 0.0
    %332 = vmatprep.subr.mxu0 0.0
    %333 = vmatpush1.msra.mxu0 0.0
    %334 = vmatprep.subr.mxu0 0.0
    %335 = vmatpush1.msra.mxu0 0.0
    %336 = vmatprep.subr.mxu0 0.0
    %337 = vmatpush1.msra.mxu0 0.0
    %338 = vmatprep.subr.mxu0 0.0
    %339 = vmatpush1.msra.mxu0 0.0
    %340 = vmatprep.subr.mxu0 0.0
    %341 = vmatpush1.msra.mxu0 0.0
    %342 = vmatprep.subr.mxu0 0.0
    %343 = vmatpush1.msra.mxu0 0.0
    %344 = vmatprep.subr.mxu0 0.0
    %345 = vmatpush1.msra.mxu0 0.0
    %346 = vmatprep.subr.mxu0 0.0
    %347 = vmatpush1.msra.mxu0 0.0
    %348 = vmatprep.subr.mxu0 0.0
    %349 = vmatpush1.msra.mxu0 0.0
    %350 = vmatprep.subr.mxu0 0.0
    %351 = vmatpush1.msra.mxu0 0.0
    %352 = vmatprep.subr.mxu0 0.0
    %353 = vmatpush1.msra.mxu0 0.0
    %354 = vmatprep.subr.mxu0 0.0
    %355 = vmatpush1.msra.mxu0 0.0
    %356 = vmatprep.subr.mxu0 0.0
    %357 = vmatpush1.msra.mxu0 0.0
    %358 = vmatprep.subr.mxu0 0.0
    %359 = vmatpush1.msra.mxu0 0.0
    %360 = vmatprep.subr.mxu0 0.0
    %361 = vmatpush1.msra.mxu0 0.0
    %362 = vmatprep.subr.mxu0 0.0
    %363 = vmatpush1.msra.mxu0 0.0
    %364 = vmatprep.mubr.f32.mxu0 0.0
    %365 = vmatmul.mubr.f32.gmra.mrb[0].mxu0 %v294
    %v366 = vpop.f32.mrb[0].mxu0
    %v367 = vadd.f32 0.0, %v366
    %v368 = vpop.f32.mrb[0].mxu0
    %369 = vdwg.mxu0
    %v370 = vld [vmem:[%s7] sm:$0xff]
    %v371 = vld [vmem:[%s7 + $0x8] sm:$0xff]
    %v372 = vld [vmem:[%s7 + $0x10] sm:$0xff]
    %v373 = vld [vmem:[%s7 + $0x18] sm:$0xff]
    %374 = vmatprep.subr.mxu0 0.0
    %375 = vmatpush1.msra.mxu0 %v370
    %376 = vmatprep.subr.mxu0 0.0
    %377 = vmatpush1.msra.mxu0 %v371
    %378 = vmatprep.subr.mxu0 0.0
    %379 = vmatpush1.msra.mxu0 %v372
    %380 = vmatprep.subr.mxu0 0.0
    %381 = vmatpush1.msra.mxu0 %v373
    %382 = vmatprep.subr.mxu0 0.0
    %383 = vmatpush1.msra.mxu0 0.0
    %384 = vmatprep.subr.mxu0 0.0
    %385 = vmatpush1.msra.mxu0 0.0
    %386 = vmatprep.subr.mxu0 0.0
    %387 = vmatpush1.msra.mxu0 0.0
    %388 = vmatprep.subr.mxu0 0.0
    %389 = vmatpush1.msra.mxu0 0.0
    %390 = vmatprep.subr.mxu0 0.0
    %391 = vmatpush1.msra.mxu0 0.0
    %392 = vmatprep.subr.mxu0 0.0
    %393 = vmatpush1.msra.mxu0 0.0
    %394 = vmatprep.subr.mxu0 0.0
    %395 = vmatpush1.msra.mxu0 0.0
    %396 = vmatprep.subr.mxu0 0.0
    %397 = vmatpush1.msra.mxu0 0.0
    %398 = vmatprep.subr.mxu0 0.0
    %399 = vmatpush1.msra.mxu0 0.0
    %400 = vmatprep.subr.mxu0 0.0
    %401 = vmatpush1.msra.mxu0 0.0
    %402 = vmatprep.subr.mxu0 0.0
    %403 = vmatpush1.msra.mxu0 0.0
    %404 = vmatprep.subr.mxu0 0.0
    %405 = vmatpush1.msra.mxu0 0.0
    %406 = vmatprep.subr.mxu0 0.0
    %407 = vmatpush1.msra.mxu0 0.0
    %408 = vmatprep.subr.mxu0 0.0
    %409 = vmatpush1.msra.mxu0 0.0
    %410 = vmatprep.subr.mxu0 0.0
    %411 = vmatpush1.msra.mxu0 0.0
    %412 = vmatprep.subr.mxu0 0.0
    %413 = vmatpush1.msra.mxu0 0.0
    %414 = vmatprep.subr.mxu0 0.0
    %415 = vmatpush1.msra.mxu0 0.0
    %416 = vmatprep.subr.mxu0 0.0
    %417 = vmatpush1.msra.mxu0 0.0
    %418 = vmatprep.subr.mxu0 0.0
    %419 = vmatpush1.msra.mxu0 0.0
    %420 = vmatprep.subr.mxu0 0.0
    %421 = vmatpush1.msra.mxu0 0.0
    %422 = vmatprep.subr.mxu0 0.0
    %423 = vmatpush1.msra.mxu0 0.0
    %424 = vmatprep.subr.mxu0 0.0
    %425 = vmatpush1.msra.mxu0 0.0
    %426 = vmatprep.subr.mxu0 0.0
    %427 = vmatpush1.msra.mxu0 0.0
    %428 = vmatprep.subr.mxu0 0.0
    %429 = vmatpush1.msra.mxu0 0.0
    %430 = vmatprep.subr.mxu0 0.0
    %431 = vmatpush1.msra.mxu0 0.0
    %432 = vmatprep.subr.mxu0 0.0
    %433 = vmatpush1.msra.mxu0 0.0
    %434 = vmatprep.subr.mxu0 0.0
    %435 = vmatpush1.msra.mxu0 0.0
    %436 = vmatprep.subr.mxu0 0.0
    %437 = vmatpush1.msra.mxu0 0.0
    %438 = vmatprep.mubr.f32.mxu0 0.0
    %439 = vmatmul.mubr.f32.gmra.mrb[0].mxu0 %v212
    %v440 = vpop.f32.mrb[0].mxu0
    %v441 = vadd.f32 0.0, %v440
    %v442 = vpop.f32.mrb[0].mxu0
    %443 = vmatprep.mubr.f32.mxu0 0.0
    %444 = vmatmul.mubr.f32.gmra.mrb[0].mxu0 %v215
    %v445 = vpop.f32.mrb[0].mxu0
    %v446 = vadd.f32 0.0, %v445
    %v447 = vpop.f32.mrb[0].mxu0
    %448 = vdwg.mxu0
    %v450 = vsel %vm292, %v128, 0
    %v453 = vsel %vm296, %v446, 0
    %455 = vmatprep.subr.mxu0 0.0
    %456 = vmatpush1.msra.mxu0 %v441
    %457 = vmatprep.subr.mxu0 0.0
    %458 = vmatpush1.msra.mxu0 %v453
    %459 = vmatprep.subr.mxu0 0.0
    %460 = vmatpush1.msra.mxu0 0.0
    %461 = vmatprep.subr.mxu0 0.0
    %462 = vmatpush1.msra.mxu0 0.0
    %463 = vmatprep.subr.mxu0 0.0
    %464 = vmatpush1.msra.mxu0 0.0
    %465 = vmatprep.subr.mxu0 0.0
    %466 = vmatpush1.msra.mxu0 0.0
    %467 = vmatprep.subr.mxu0 0.0
    %468 = vmatpush1.msra.mxu0 0.0
    %469 = vmatprep.subr.mxu0 0.0
    %470 = vmatpush1.msra.mxu0 0.0
    %471 = vmatprep.subr.mxu0 0.0
    %472 = vmatpush1.msra.mxu0 0.0
    %473 = vmatprep.subr.mxu0 0.0
    %474 = vmatpush1.msra.mxu0 0.0
    %475 = vmatprep.subr.mxu0 0.0
    %476 = vmatpush1.msra.mxu0 0.0
    %477 = vmatprep.subr.mxu0 0.0
    %478 = vmatpush1.msra.mxu0 0.0
    %479 = vmatprep.subr.mxu0 0.0
    %480 = vmatpush1.msra.mxu0 0.0
    %481 = vmatprep.subr.mxu0 0.0
    %482 = vmatpush1.msra.mxu0 0.0
    %483 = vmatprep.subr.mxu0 0.0
    %484 = vmatpush1.msra.mxu0 0.0
    %485 = vmatprep.subr.mxu0 0.0
    %486 = vmatpush1.msra.mxu0 0.0
    %487 = vmatprep.subr.mxu0 0.0
    %488 = vmatpush1.msra.mxu0 0.0
    %489 = vmatprep.subr.mxu0 0.0
    %490 = vmatpush1.msra.mxu0 0.0
    %491 = vmatprep.subr.mxu0 0.0
    %492 = vmatpush1.msra.mxu0 0.0
    %493 = vmatprep.subr.mxu0 0.0
    %494 = vmatpush1.msra.mxu0 0.0
    %495 = vmatprep.subr.mxu0 0.0
    %496 = vmatpush1.msra.mxu0 0.0
    %497 = vmatprep.subr.mxu0 0.0
    %498 = vmatpush1.msra.mxu0 0.0
    %499 = vmatprep.subr.mxu0 0.0
    %500 = vmatpush1.msra.mxu0 0.0
    %501 = vmatprep.subr.mxu0 0.0
    %502 = vmatpush1.msra.mxu0 0.0
    %503 = vmatprep.subr.mxu0 0.0
    %504 = vmatpush1.msra.mxu0 0.0
    %505 = vmatprep.subr.mxu0 0.0
    %506 = vmatpush1.msra.mxu0 0.0
    %507 = vmatprep.subr.mxu0 0.0
    %508 = vmatpush1.msra.mxu0 0.0
    %509 = vmatprep.subr.mxu0 0.0
    %510 = vmatpush1.msra.mxu0 0.0
    %511 = vmatprep.subr.mxu0 0.0
    %512 = vmatpush1.msra.mxu0 0.0
    %513 = vmatprep.subr.mxu0 0.0
    %514 = vmatpush1.msra.mxu0 0.0
    %515 = vmatprep.subr.mxu0 0.0
    %516 = vmatpush1.msra.mxu0 0.0
    %517 = vmatprep.subr.mxu0 0.0
    %518 = vmatpush1.msra.mxu0 0.0
    %519 = vmatprep.mubr.f32.mxu0 0.0
    %520 = vmatmul.mubr.f32.gmra.mrb[0].mxu0 %v450
    %v521 = vpop.f32.mrb[0].mxu0
    %v522 = vadd.f32 0.0, %v521
    %v523 = vpop.f32.mrb[0].mxu0
    %524 = vdwg.mxu0
    %v525 = vlaneseq
    %v526 = vshrl.u32 %v525, 7
    %v527 = vsub.s32 0, %v526
    %v528 = vrot.slane %v204, %v527
    %v529 = vadd.f32 %v528, %v367
    %v530 = vadd.f32 %v529, %v522
    %v531 = vld [vmem:[%s8] sm:$0x1]
    %v533 = vlaneseq
    %v534 = vshrl.u32 %v533, 7
    %v535 = vsub.s32 0, %v534
    %v536 = vrot.slane %v531, %v535
    %v538 = vadd.f32 %v530, %v536
    %vm539 = vcmask 52224
    %v540 = vsel %vm539, %v538, -inf
    %541 = vmax.xlane.f32.xlu0 %v540
    %v542 = vpop.xlane.xlu0 %541
    %v543 = vsub.f32 %v538, %v542
    %v544 = vmul.f32 %v543, 1.442695
    %v545 = vpow.pop %v544
    %v546 = vsel %vm539, %v545, 0.0
    %547 = vadd.xlane.f32.xlu0 %v546
    %v548 = vpop.xlane.xlu0 %547
    %v549 = vrcp.pop %v548
    %v550 = vmul.f32 %v545, %v549
    %551 = vst.msk [vmem:[#allocation3] sm:$0xf] %vm539, %v550
    %v552 = vld [vmem:[%s2] sm:$0x7f]
    %vm553 = vcmask 56320
    %v555 = vsel %vm553, %v550, 0
    %vm557 = vcmask 1046528
    %v559 = vsel %vm557, %v552, 0
    %561 = vmatprep.subr.mxu0 0.0
    %562 = vmatpush1.msra.mxu0 %v559
    %563 = vmatprep.subr.mxu0 0.0
    %564 = vmatpush1.msra.mxu0 0.0
    %565 = vmatprep.subr.mxu0 0.0
    %566 = vmatpush1.msra.mxu0 0.0
    %567 = vmatprep.subr.mxu0 0.0
    %568 = vmatpush1.msra.mxu0 0.0
    %569 = vmatprep.subr.mxu0 0.0
    %570 = vmatpush1.msra.mxu0 0.0
    %571 = vmatprep.subr.mxu0 0.0
    %572 = vmatpush1.msra.mxu0 0.0
    %573 = vmatprep.subr.mxu0 0.0
    %574 = vmatpush1.msra.mxu0 0.0
    %575 = vmatprep.subr.mxu0 0.0
    %576 = vmatpush1.msra.mxu0 0.0
    %577 = vmatprep.subr.mxu0 0.0
    %578 = vmatpush1.msra.mxu0 0.0
    %579 = vmatprep.subr.mxu0 0.0
    %580 = vmatpush1.msra.mxu0 0.0
    %581 = vmatprep.subr.mxu0 0.0
    %582 = vmatpush1.msra.mxu0 0.0
    %583 = vmatprep.subr.mxu0 0.0
    %584 = vmatpush1.msra.mxu0 0.0
    %585 = vmatprep.subr.mxu0 0.0
    %586 = vmatpush1.msra.mxu0 0.0
    %587 = vmatprep.subr.mxu0 0.0
    %588 = vmatpush1.msra.mxu0 0.0
    %589 = vmatprep.subr.mxu0 0.0
    %590 = vmatpush1.msra.mxu0 0.0
    %591 = vmatprep.subr.mxu0 0.0
    %592 = vmatpush1.msra.mxu0 0.0
    %593 = vmatprep.subr.mxu0 0.0
    %594 = vmatpush1.msra.mxu0 0.0
    %595 = vmatprep.subr.mxu0 0.0
    %596 = vmatpush1.msra.mxu0 0.0
    %597 = vmatprep.subr.mxu0 0.0
    %598 = vmatpush1.msra.mxu0 0.0
    %599 = vmatprep.subr.mxu0 0.0
    %600 = vmatpush1.msra.mxu0 0.0
    %601 = vmatprep.subr.mxu0 0.0
    %602 = vmatpush1.msra.mxu0 0.0
    %603 = vmatprep.subr.mxu0 0.0
    %604 = vmatpush1.msra.mxu0 0.0
    %605 = vmatprep.subr.mxu0 0.0
    %606 = vmatpush1.msra.mxu0 0.0
    %607 = vmatprep.subr.mxu0 0.0
    %608 = vmatpush1.msra.mxu0 0.0
    %609 = vmatprep.subr.mxu0 0.0
    %610 = vmatpush1.msra.mxu0 0.0
    %611 = vmatprep.subr.mxu0 0.0
    %612 = vmatpush1.msra.mxu0 0.0
    %613 = vmatprep.subr.mxu0 0.0
    %614 = vmatpush1.msra.mxu0 0.0
    %615 = vmatprep.subr.mxu0 0.0
    %616 = vmatpush1.msra.mxu0 0.0
    %617 = vmatprep.subr.mxu0 0.0
    %618 = vmatpush1.msra.mxu0 0.0
    %619 = vmatprep.subr.mxu0 0.0
    %620 = vmatpush1.msra.mxu0 0.0
    %621 = vmatprep.subr.mxu0 0.0
    %622 = vmatpush1.msra.mxu0 0.0
    %623 = vmatprep.subr.mxu0 0.0
    %624 = vmatpush1.msra.mxu0 0.0
    %625 = vmatprep.mubr.f32.mxu0 0.0
    %626 = vmatmul.mubr.f32.gmra.mrb[0].mxu0 %v555
    %v627 = vpop.f32.mrb[0].mxu0
    %v628 = vadd.f32 0.0, %v627
    %v629 = vpop.f32.mrb[0].mxu0
    %630 = vdwg.mxu0
    %vm631 = vcmask 814080
    %632 = vst.msk [vmem:[#allocation5] sm:$0xf] %vm631, %v628
    // Predicated region
    $region38: #{tpu_custom_call.1} parent=1 // pred_check
      _
    $region39: #{tpu_custom_call.1} parent=1 // pred_check_branch
      %634 = sbr.rel (0) target = $region41
    $region40: #{tpu_custom_call.1} parent=1 // pred_region
      %s636 = ssub.s32 64, 64
      %637 = vsyncadd [#allocation4], %s636
      %s639 = sshll.u32 [#allocation3], 4
      %s640 = int_to_ptr.vmem [resolvable:$true] %s639
      %642 = dma.vmem_to_hbm [thread:$0]  %s640, 64, %s9, [#allocation4]
    $region41: #{tpu_custom_call.1} parent=1 // pred_fallthru
      _
    // Predicated region
    $region42: #{tpu_custom_call.1} parent=1 // pred_check
      _
    $region43: #{tpu_custom_call.1} parent=1 // pred_check_branch
      %644 = sbr.rel (0) target = $region45
    $region44: #{tpu_custom_call.1} parent=1 // pred_region
      %s646 = ssub.s32 64, 64
      %647 = vsyncadd [#allocation6], %s646
      %s649 = sshll.u32 [#allocation5], 4
      %s650 = int_to_ptr.vmem [resolvable:$true] %s649
      %652 = dma.vmem_to_hbm [thread:$0]  %s650, 64, %s10, [#allocation6]
    $region45: #{tpu_custom_call.1} parent=1 // pred_fallthru
      _
    // Predicated region
    $region46: #{tpu_custom_call.1} parent=1 // pred_check
      _
    $region47: #{tpu_custom_call.1} parent=1 // pred_check_branch
      %654 = sbr.rel (0) target = $region49
    $region48: #{tpu_custom_call.1} parent=1 // pred_region
      %655 = dma.done [#allocation4], 64
    $region49: #{tpu_custom_call.1} parent=1 // pred_fallthru
      _
    // Predicated region
    $region50: #{tpu_custom_call.1} parent=1 // pred_check
      _
    $region51: #{tpu_custom_call.1} parent=1 // pred_check_branch
      %657 = sbr.rel (0) target = $region53
    $region52: #{tpu_custom_call.1} parent=1 // pred_region
      %658 = dma.done [#allocation6], 64
    $region53: #{tpu_custom_call.1} parent=1 // pred_fallthru
      _
    %659 = vsyncpa [#allocation4], 1
    %660 = vsyncpa [#allocation6], 1

</llo_original>
